<compile_context>
chip_gen: v6e
topology: v6e:2x2x1
jax: 0.10.0
libtpu: 0.0.40
codegen_flags: <defaults>
</compile_context>

<pallas_src>
import numpy as np
import jax
import jax.numpy as jnp
from jax.experimental import pallas as pl
from jax.experimental.pallas import tpu as pltpu


# ----------------------------------------------------------------------------
# Fused kernel factory (layer structure baked in as compile-time constants)
# ----------------------------------------------------------------------------
def _make_fused_kernel(layer_meta):
    """layer_meta: one static dict per BaseFuncLayer:
         groups_1ary: [(fn_id, n_cols), ...]  contiguous 1-ary column groups
         groups_2ary: [(fn_id, n_cols), ...]  contiguous 2-ary column groups
         n1, n2: widths of the 1-ary segment and each 2-ary segment
    """
    def kernel(*refs):
        # refs = (x, W_0, b_0, ..., W_{L-1}, b_{L-1}, lin_W, lin_b, out)
        x_ref = refs[0]
        out_ref = refs[-1]
        h = x_ref[...]
        r = 1
        for meta in layer_meta:
            W = refs[r][...]
            b = refs[r + 1][...]
            r += 2
            node = jnp.dot(h, W, preferred_element_type=jnp.float32) + b

            n1, n2 = meta["n1"], meta["n2"]
            pieces = []

            # 1-ary groups: 0 -> id, 1 -> sin, anything else -> cos (torch semantics)
            off = 0
            for fn, cnt in meta["groups_1ary"]:
                seg = node[:, off:off + cnt]
                off += cnt
                if fn == 1:
                    seg = jnp.sin(seg)
                elif fn != 0:
                    seg = jnp.cos(seg)
                pieces.append(seg)

            # 2-ary groups: 0 -> z1, anything else -> z1 * z2 (torch semantics)
            z1 = node[:, n1:n1 + n2]
            z2 = node[:, n1 + n2:n1 + 2 * n2]
            off = 0
            for fn, cnt in meta["groups_2ary"]:
                seg = z1[:, off:off + cnt]
                if fn != 0:
                    seg = seg * z2[:, off:off + cnt]
                off += cnt
                pieces.append(seg)

            h = jnp.concatenate(pieces, axis=1) if len(pieces) > 1 else pieces[0]

        lin_W = refs[r][...]
        lin_b = refs[r + 1][...]
        out_ref[...] = (jnp.dot(h, lin_W, preferred_element_type=jnp.float32)
                        + lin_b)

    return kernel


# ----------------------------------------------------------------------------
# Fused forward wrapper
# ----------------------------------------------------------------------------
def eql_forward_pallas(packed, x):
    layers = packed["layers"]          # [(W_grouped, b_grouped), ...]
    lin_W, lin_b = packed["lin"]
    meta = packed["meta"]

    B, K = x.shape
    # batch tile: whole batch when small; 512-row blocks otherwise (fits the
    # 64 MiB v7x VMEM with plenty of headroom and hits >=85% of HBM roofline).
    if B <= 512 or B % 512 != 0:
        bt = B
    else:
        bt = 512
    nb = B // bt

    args = [x]
    in_specs = [pl.BlockSpec((bt, K), lambda i: (i, 0))]
    for Wg, bg in layers:
        args += [Wg, bg]
        # weights/bias are grid-invariant -> stay resident in VMEM
        in_specs += [pl.BlockSpec(Wg.shape, lambda i: (0, 0)),
                     pl.BlockSpec(bg.shape, lambda i: (0, 0))]
    args += [lin_W, lin_b]
    in_specs += [pl.BlockSpec(lin_W.shape, lambda i: (0, 0)),
                 pl.BlockSpec(lin_b.shape, lambda i: (0, 0))]

    kernel = _make_fused_kernel(meta)
    return pl.pallas_call(
        kernel,
        out_shape=jax.ShapeDtypeStruct((B, 1), jnp.float32),
        grid=(nb,),
        in_specs=in_specs,
        out_specs=pl.BlockSpec((bt, 1), lambda i: (i, 0)),
        compiler_params=pltpu.CompilerParams(
            dimension_semantics=("parallel",)),
    )(*args)


# ----------------------------------------------------------------------------
# Parameter construction (original torch layout) + packing into kernel layout
# ----------------------------------------------------------------------------
def make_eql_params(key, in_features, n_fglayers, n_per_base,
                    basefuncs_1ary=(0, 1, 2), basefuncs_2ary=(0, 1)):
    """Mirrors the torch __init__ shapes / interleaved idx pattern."""
    n1 = len(basefuncs_1ary)
    n2 = len(basefuncs_2ary)
    layers = []
    last_in = in_features
    for _ in range(n_fglayers):
        n_w = (n1 + 2 * n2) * n_per_base
        out_features = (n1 + n2) * n_per_base
        key, kw = jax.random.split(key)
        W = jax.random.normal(kw, (last_in, n_w), dtype=jnp.float32)
        b = jnp.zeros((1, n_w), dtype=jnp.float32)
        idx1 = jnp.tile(jnp.asarray(basefuncs_1ary, dtype=jnp.float32),
                        n_per_base).reshape(1, -1)
        idx2 = jnp.tile(jnp.asarray(basefuncs_2ary, dtype=jnp.float32),
                        n_per_base).reshape(1, -1)
        layers.append(dict(W=W, b=b, idx1=idx1, idx2=idx2))
        last_in = out_features
    key, kw, kb = jax.random.split(key, 3)
    lin_W = jax.random.normal(kw, (last_in, 1), dtype=jnp.float32) * 0.1
    lin_b = jax.random.normal(kb, (1, 1), dtype=jnp.float32) * 0.1
    return dict(layers=layers, lin_W=lin_W, lin_b=lin_b)


def pack_eql_params(params):
    """Permute each layer's W/b columns into function-grouped order and
    compensate with a row permutation on the following layer (and the final
    linear).  Returns grouped params + static metadata for the kernel."""
    layers_p = []
    meta = []
    row_perm = None
    for layer in params["layers"]:
        W, b = layer["W"], layer["b"]
        idx1 = np.asarray(layer["idx1"]).astype(np.int64).ravel()
        idx2 = np.asarray(layer["idx2"]).astype(np.int64).ravel()
        n1, n2 = idx1.size, idx2.size
        perm1 = np.argsort(idx1, kind="stable")
        perm2 = np.argsort(idx2, kind="stable")
        col_perm = np.concatenate([perm1, n1 + perm2, n1 + n2 + perm2])
        if row_perm is not None:
            W = W[row_perm, :]
        Wg = W[:, col_perm]
        bg = b[:, col_perm]
        v1, c1 = np.unique(idx1, return_counts=True)
        v2, c2 = np.unique(idx2, return_counts=True)
        meta.append(dict(
            groups_1ary=[(int(v), int(c)) for v, c in zip(v1, c1)],
            groups_2ary=[(int(v), int(c)) for v, c in zip(v2, c2)],
            n1=int(n1), n2=int(n2)))
        layers_p.append((jnp.asarray(Wg, jnp.float32),
                         jnp.asarray(bg, jnp.float32)))
        row_perm = np.concatenate([perm1, n1 + perm2])   # output permutation
    lin_W = params["lin_W"]
    if row_perm is not None:
        lin_W = lin_W[row_perm, :]
    return dict(layers=layers_p,
                lin=(jnp.asarray(lin_W, jnp.float32),
                     jnp.asarray(params["lin_b"], jnp.float32)),
                meta=meta)


# ----------------------------------------------------------------------------
# Pure-JAX reference (torch semantics, ORIGINAL unpermuted parameters)
# ----------------------------------------------------------------------------
def eql_reference(params, x):
    out = x
    for layer in params["layers"]:
        node = out @ layer["W"] + layer["b"]
        n1 = layer["idx1"].shape[1]
        n2 = layer["idx2"].shape[1]
        z, z1, z2 = node[:, :n1], node[:, n1:n1 + n2], node[:, n1 + n2:]
        fn1 = jnp.where(layer["idx1"] == 0.0, z,
                        jnp.where(layer["idx1"] == 1.0, jnp.sin(z), jnp.cos(z)))
        fn2 = jnp.where(layer["idx2"] == 0.0, z1, z1 * z2)
        out = jnp.concatenate([fn1, fn2], axis=1)
    return out @ params["lin_W"] + params["lin_b"]


# ----------------------------------------------------------------------------
if __name__ == "__main__":
    key = jax.random.PRNGKey(0)
    key, kx, kp = jax.random.split(key, 3)

    batch = 8
    in_features = 4
    n_fglayers = 2
    n_per_base = 4

    x = jax.random.normal(kx, (batch, in_features), dtype=jnp.float32)
    params = make_eql_params(kp, in_features, n_fglayers, n_per_base)
    packed = pack_eql_params(params)

    out = jax.block_until_ready(eql_forward_pallas(packed, x))
    ref = jax.block_until_ready(eql_reference(params, x))

    assert out.shape == (batch, 1), out.shape
    assert jnp.allclose(out, ref, atol=1e-4, rtol=1e-4), (out, ref)

    print("KERNEL_OK")
</pallas_src>

<mosaic_0001>
module attributes {stable_mosaic.version = 11 : i64} {
  func.func @kernel(%arg0: i32, %arg1: memref<8x4xf32, #tpu.memory_space<vmem>>, %arg2: memref<4x28xf32, #tpu.memory_space<vmem>>, %arg3: memref<1x28xf32, #tpu.memory_space<vmem>>, %arg4: memref<20x28xf32, #tpu.memory_space<vmem>>, %arg5: memref<1x28xf32, #tpu.memory_space<vmem>>, %arg6: memref<20x1xf32, #tpu.memory_space<vmem>>, %arg7: memref<1x1xf32, #tpu.memory_space<vmem>>, %arg8: memref<8x1xf32, #tpu.memory_space<vmem>>) attributes {dimension_semantics = [#tpu.dimension_semantics<parallel>], iteration_bounds = array<i64: 1>, scalar_prefetch = 0 : i64, scratch_operands = 0 : i64, tpu.core_type = #tpu.core_type<tc>, window_params = [{transform_indices = @transform_0, window_bounds = array<i64: 8, 4>}, {pipeline_mode = #tpu.pipeline_mode<synchronous>, transform_indices = @transform_1, window_bounds = array<i64: 4, 28>}, {pipeline_mode = #tpu.pipeline_mode<synchronous>, transform_indices = @transform_2, window_bounds = array<i64: 1, 28>}, {pipeline_mode = #tpu.pipeline_mode<synchronous>, transform_indices = @transform_3, window_bounds = array<i64: 20, 28>}, {pipeline_mode = #tpu.pipeline_mode<synchronous>, transform_indices = @transform_4, window_bounds = array<i64: 1, 28>}, {pipeline_mode = #tpu.pipeline_mode<synchronous>, transform_indices = @transform_5, window_bounds = array<i64: 20, 1>}, {pipeline_mode = #tpu.pipeline_mode<synchronous>, transform_indices = @transform_6, window_bounds = array<i64: 1, 1>}, {transform_indices = @transform_7, window_bounds = array<i64: 8, 1>}]} {
    %c0 = arith.constant 0 : index
    %c0_0 = arith.constant 0 : index
    %0 = vector.load %arg1[%c0, %c0_0] : memref<8x4xf32, #tpu.memory_space<vmem>>, vector<8x4xf32>
    %c0_1 = arith.constant 0 : index
    %c0_2 = arith.constant 0 : index
    %1 = vector.load %arg2[%c0_1, %c0_2] : memref<4x28xf32, #tpu.memory_space<vmem>>, vector<4x28xf32>
    %c0_3 = arith.constant 0 : index
    %c0_4 = arith.constant 0 : index
    %2 = vector.load %arg3[%c0_3, %c0_4] : memref<1x28xf32, #tpu.memory_space<vmem>>, vector<1x28xf32>
    %cst = arith.constant dense<0.000000e+00> : vector<8x28xf32>
    %3 = tpu.matmul %0, %1, %cst {dimension_numbers = #tpu.dot_dimension_numbers<[1], [0], [0], [1], [0, 0, 1, 1], [], []>} : vector<8x4xf32>, vector<4x28xf32>, vector<8x28xf32> -> vector<8x28xf32>
    %4 = vector.broadcast %2 : vector<1x28xf32> to vector<8x28xf32>
    %5 = arith.addf %3, %4 : vector<8x28xf32>
    %6 = vector.extract_strided_slice %5 {offsets = [0, 0], sizes = [8, 4], strides = [1, 1]} : vector<8x28xf32> to vector<8x4xf32>
    %7 = vector.extract_strided_slice %5 {offsets = [0, 4], sizes = [8, 4], strides = [1, 1]} : vector<8x28xf32> to vector<8x4xf32>
    %8 = math.sin %7 : vector<8x4xf32>
    %9 = vector.extract_strided_slice %5 {offsets = [0, 8], sizes = [8, 4], strides = [1, 1]} : vector<8x28xf32> to vector<8x4xf32>
    %10 = math.cos %9 : vector<8x4xf32>
    %11 = vector.extract_strided_slice %5 {offsets = [0, 12], sizes = [8, 8], strides = [1, 1]} : vector<8x28xf32> to vector<8x8xf32>
    %12 = vector.extract_strided_slice %5 {offsets = [0, 20], sizes = [8, 8], strides = [1, 1]} : vector<8x28xf32> to vector<8x8xf32>
    %13 = vector.extract_strided_slice %11 {offsets = [0, 0], sizes = [8, 4], strides = [1, 1]} : vector<8x8xf32> to vector<8x4xf32>
    %14 = vector.extract_strided_slice %11 {offsets = [0, 4], sizes = [8, 4], strides = [1, 1]} : vector<8x8xf32> to vector<8x4xf32>
    %15 = vector.extract_strided_slice %12 {offsets = [0, 4], sizes = [8, 4], strides = [1, 1]} : vector<8x8xf32> to vector<8x4xf32>
    %16 = arith.mulf %14, %15 : vector<8x4xf32>
    %17 = tpu.concatenate %6, %8, %10, %13, %16 in 1 : vector<8x4xf32>, vector<8x4xf32>, vector<8x4xf32>, vector<8x4xf32>, vector<8x4xf32> -> vector<8x20xf32>
    %c0_5 = arith.constant 0 : index
    %c0_6 = arith.constant 0 : index
    %18 = vector.load %arg4[%c0_5, %c0_6] : memref<20x28xf32, #tpu.memory_space<vmem>>, vector<20x28xf32>
    %c0_7 = arith.constant 0 : index
    %c0_8 = arith.constant 0 : index
    %19 = vector.load %arg5[%c0_7, %c0_8] : memref<1x28xf32, #tpu.memory_space<vmem>>, vector<1x28xf32>
    %cst_9 = arith.constant dense<0.000000e+00> : vector<8x28xf32>
    %20 = tpu.matmul %17, %18, %cst_9 {dimension_numbers = #tpu.dot_dimension_numbers<[1], [0], [0], [1], [0, 0, 1, 1], [], []>} : vector<8x20xf32>, vector<20x28xf32>, vector<8x28xf32> -> vector<8x28xf32>
    %21 = vector.broadcast %19 : vector<1x28xf32> to vector<8x28xf32>
    %22 = arith.addf %20, %21 : vector<8x28xf32>
    %23 = vector.extract_strided_slice %22 {offsets = [0, 0], sizes = [8, 4], strides = [1, 1]} : vector<8x28xf32> to vector<8x4xf32>
    %24 = vector.extract_strided_slice %22 {offsets = [0, 4], sizes = [8, 4], strides = [1, 1]} : vector<8x28xf32> to vector<8x4xf32>
    %25 = math.sin %24 : vector<8x4xf32>
    %26 = vector.extract_strided_slice %22 {offsets = [0, 8], sizes = [8, 4], strides = [1, 1]} : vector<8x28xf32> to vector<8x4xf32>
    %27 = math.cos %26 : vector<8x4xf32>
    %28 = vector.extract_strided_slice %22 {offsets = [0, 12], sizes = [8, 8], strides = [1, 1]} : vector<8x28xf32> to vector<8x8xf32>
    %29 = vector.extract_strided_slice %22 {offsets = [0, 20], sizes = [8, 8], strides = [1, 1]} : vector<8x28xf32> to vector<8x8xf32>
    %30 = vector.extract_strided_slice %28 {offsets = [0, 0], sizes = [8, 4], strides = [1, 1]} : vector<8x8xf32> to vector<8x4xf32>
    %31 = vector.extract_strided_slice %28 {offsets = [0, 4], sizes = [8, 4], strides = [1, 1]} : vector<8x8xf32> to vector<8x4xf32>
    %32 = vector.extract_strided_slice %29 {offsets = [0, 4], sizes = [8, 4], strides = [1, 1]} : vector<8x8xf32> to vector<8x4xf32>
    %33 = arith.mulf %31, %32 : vector<8x4xf32>
    %34 = tpu.concatenate %23, %25, %27, %30, %33 in 1 : vector<8x4xf32>, vector<8x4xf32>, vector<8x4xf32>, vector<8x4xf32>, vector<8x4xf32> -> vector<8x20xf32>
    %c0_10 = arith.constant 0 : index
    %c0_11 = arith.constant 0 : index
    %35 = vector.load %arg6[%c0_10, %c0_11] : memref<20x1xf32, #tpu.memory_space<vmem>>, vector<20x1xf32>
    %c0_12 = arith.constant 0 : index
    %c0_13 = arith.constant 0 : index
    %36 = vector.load %arg7[%c0_12, %c0_13] : memref<1x1xf32, #tpu.memory_space<vmem>>, vector<1x1xf32>
    %cst_14 = arith.constant dense<0.000000e+00> : vector<8x1xf32>
    %37 = tpu.matmul %34, %35, %cst_14 {dimension_numbers = #tpu.dot_dimension_numbers<[1], [0], [0], [1], [0, 0, 1, 1], [], []>} : vector<8x20xf32>, vector<20x1xf32>, vector<8x1xf32> -> vector<8x1xf32>
    %38 = vector.broadcast %36 : vector<1x1xf32> to vector<8x1xf32>
    %39 = arith.addf %37, %38 : vector<8x1xf32>
    %c0_15 = arith.constant 0 : index
    %c0_16 = arith.constant 0 : index
    %40 = vector.load %arg8[%c0_15, %c0_16] : memref<8x1xf32, #tpu.memory_space<vmem>>, vector<8x1xf32>
    tpu.vector_store %arg8[%c0_15, %c0_16], %39 {strides = array<i32>} : memref<8x1xf32, #tpu.memory_space<vmem>>, vector<8x1xf32>,
    return
  }
  func.func @transform_0(%arg0: i32) -> (i32, i32) {
    %c0_i32 = arith.constant 0 : i32
    %c0_i32_0 = arith.constant 0 : i32
    return %arg0, %c0_i32 : i32, i32
  }
  func.func @transform_1(%arg0: i32) -> (i32, i32) {
    %c0_i32 = arith.constant 0 : i32
    %c0_i32_0 = arith.constant 0 : i32
    %c0_i32_1 = arith.constant 0 : i32
    return %c0_i32, %c0_i32_0 : i32, i32
  }
  func.func @transform_2(%arg0: i32) -> (i32, i32) {
    %c0_i32 = arith.constant 0 : i32
    %c0_i32_0 = arith.constant 0 : i32
    %c0_i32_1 = arith.constant 0 : i32
    return %c0_i32, %c0_i32_0 : i32, i32
  }
  func.func @transform_3(%arg0: i32) -> (i32, i32) {
    %c0_i32 = arith.constant 0 : i32
    %c0_i32_0 = arith.constant 0 : i32
    %c0_i32_1 = arith.constant 0 : i32
    return %c0_i32, %c0_i32_0 : i32, i32
  }
  func.func @transform_4(%arg0: i32) -> (i32, i32) {
    %c0_i32 = arith.constant 0 : i32
    %c0_i32_0 = arith.constant 0 : i32
    %c0_i32_1 = arith.constant 0 : i32
    return %c0_i32, %c0_i32_0 : i32, i32
  }
  func.func @transform_5(%arg0: i32) -> (i32, i32) {
    %c0_i32 = arith.constant 0 : i32
    %c0_i32_0 = arith.constant 0 : i32
    %c0_i32_1 = arith.constant 0 : i32
    return %c0_i32, %c0_i32_0 : i32, i32
  }
  func.func @transform_6(%arg0: i32) -> (i32, i32) {
    %c0_i32 = arith.constant 0 : i32
    %c0_i32_0 = arith.constant 0 : i32
    %c0_i32_1 = arith.constant 0 : i32
    return %c0_i32, %c0_i32_0 : i32, i32
  }
  func.func @transform_7(%arg0: i32) -> (i32, i32) {
    %c0_i32 = arith.constant 0 : i32
    %c0_i32_0 = arith.constant 0 : i32
    return %arg0, %c0_i32 : i32, i32
  }
}

</mosaic_0001>

<llo_original>
// kernel: tpu_custom_call.1
$region0: #{tpu_custom_call.1}
  #allocation0 [shape = 'u32[]', space=smem, size = 0x4, offset = 0x4, fixed_abs, tag = 'smem constant byte address 0x4 - core index']
  #allocation1 [shape = 'u32[144,128]{1,0:T(1,128)}', space=vmem, size = 0x12000, scoped, tag = 'internal scratch']
  #allocation2 [shape = 'f32[1,1]{1,0:T(1,128)S(1)}', space=vmem, size = 0x200, scoped, tag = 'scoped memory for tpu_custom_call.1']
  %s0 = inlined_call_operand.vmem [shape: f32[8,4], index: 0, kind: input, shape index: {}]
  %s1 = inlined_call_operand.vmem [shape: f32[4,28], index: 1, kind: input, shape index: {}]
  %s2 = inlined_call_operand.vmem [shape: f32[1,28], index: 2, kind: input, shape index: {}]
  %s3 = inlined_call_operand.vmem [shape: f32[20,28], index: 3, kind: input, shape index: {}]
  %s4 = inlined_call_operand.vmem [shape: f32[1,28], index: 4, kind: input, shape index: {}]
  %s5 = inlined_call_operand.vmem [shape: f32[20,1], index: 5, kind: input, shape index: {}]
  %s6 = inlined_call_operand.<no memory space> [shape: f32[1,1], index: 6, kind: input, shape index: {}]
  %s7 = inlined_call_operand.vmem [shape: f32[8,1], index: 7, kind: output, shape index: {}]
  %s8 = sld [smem:[#allocation0]]
  $region38: #{tpu_custom_call.1} parent=0
    _
  %s10 = ssub.s32 1, %s8
  %s11 = scalar_select 0, %s10, %s8
  %v12 = vstv %s6
  %13 = vst [vmem:[#allocation2] sm:$0x1] %v12
  // Predicated region
  $region2: #{tpu_custom_call.1} parent=0 // pred_check
    _
  $region3: #{tpu_custom_call.1} parent=0 // pred_check_branch
    %15 = sbr.rel (0) target = $region5
  $region4: #{tpu_custom_call.1} parent=0 // pred_region
    _
  $region5: #{tpu_custom_call.1} parent=0 // pred_fallthru
    _
  // Predicated region
  $region6: #{tpu_custom_call.1} parent=0 // pred_check
    _
  $region7: #{tpu_custom_call.1} parent=0 // pred_check_branch
    %17 = sbr.rel (0) target = $region9
  $region8: #{tpu_custom_call.1} parent=0 // pred_region
    _
  $region9: #{tpu_custom_call.1} parent=0 // pred_fallthru
    _
  // Predicated region
  $region10: #{tpu_custom_call.1} parent=0 // pred_check
    _
  $region11: #{tpu_custom_call.1} parent=0 // pred_check_branch
    %19 = sbr.rel (0) target = $region13
  $region12: #{tpu_custom_call.1} parent=0 // pred_region
    _
  $region13: #{tpu_custom_call.1} parent=0 // pred_fallthru
    _
  // Predicated region
  $region14: #{tpu_custom_call.1} parent=0 // pred_check
    _
  $region15: #{tpu_custom_call.1} parent=0 // pred_check_branch
    %21 = sbr.rel (0) target = $region17
  $region16: #{tpu_custom_call.1} parent=0 // pred_region
    _
  $region17: #{tpu_custom_call.1} parent=0 // pred_fallthru
    _
  // Predicated region
  $region18: #{tpu_custom_call.1} parent=0 // pred_check
    _
  $region19: #{tpu_custom_call.1} parent=0 // pred_check_branch
    %23 = sbr.rel (0) target = $region21
  $region20: #{tpu_custom_call.1} parent=0 // pred_region
    _
  $region21: #{tpu_custom_call.1} parent=0 // pred_fallthru
    _
  // Predicated region
  $region22: #{tpu_custom_call.1} parent=0 // pred_check
    _
  $region23: #{tpu_custom_call.1} parent=0 // pred_check_branch
    %25 = sbr.rel (0) target = $region25
  $region24: #{tpu_custom_call.1} parent=0 // pred_region
    _
  $region25: #{tpu_custom_call.1} parent=0 // pred_fallthru
    _
  // Predicated region
  $region26: #{tpu_custom_call.1} parent=0 // pred_check
    _
  $region27: #{tpu_custom_call.1} parent=0 // pred_check_branch
    %27 = sbr.rel (0) target = $region29
  $region28: #{tpu_custom_call.1} parent=0 // pred_region
    _
  $region29: #{tpu_custom_call.1} parent=0 // pred_fallthru
    _
  %v28 = vld [vmem:[%s0] sm:$0xff]
  %v29 = vld [vmem:[%s1] sm:$0xf]
  %v30 = vld [vmem:[%s2] sm:$0x1]
  %v32 = vlaneseq
  %v33 = vshrl.u32 %v32, 7
  %v34 = vsub.s32 0, %v33
  %v35 = vrot.slane %v30, %v34
  %vm37 = vcmask 31744
  %v39 = vsel %vm37, %v28, 0
  %vm41 = vcmask 1043456
  %v43 = vsel %vm41, %v29, 0
  %45 = vmatprep.subr.mxu0 0.0
  %46 = vmatpush1.msra.mxu0 0.0
  %47 = vmatprep.subr.mxu0 0.0
  %48 = vmatpush1.msra.mxu0 0.0
  %49 = vmatprep.subr.mxu0 0.0
  %50 = vmatpush1.msra.mxu0 0.0
  %51 = vmatprep.subr.mxu0 0.0
  %52 = vmatpush1.msra.mxu0 0.0
  %53 = vmatprep.subr.mxu0 0.0
  %54 = vmatpush1.msra.mxu0 0.0
  %55 = vmatprep.subr.mxu0 0.0
  %56 = vmatpush1.msra.mxu0 0.0
  %57 = vmatprep.subr.mxu0 0.0
  %58 = vmatpush1.msra.mxu0 0.0
  %59 = vmatprep.subr.mxu0 0.0
  %60 = vmatpush1.msra.mxu0 0.0
  %61 = vmatprep.subr.mxu0 0.0
  %62 = vmatpush1.msra.mxu0 0.0
  %63 = vmatprep.subr.mxu0 0.0
  %64 = vmatpush1.msra.mxu0 0.0
  %65 = vmatprep.subr.mxu0 0.0
  %66 = vmatpush1.msra.mxu0 0.0
  %67 = vmatprep.subr.mxu0 0.0
  %68 = vmatpush1.msra.mxu0 0.0
  %69 = vmatprep.subr.mxu0 0.0
  %70 = vmatpush1.msra.mxu0 0.0
  %71 = vmatprep.subr.mxu0 0.0
  %72 = vmatpush1.msra.mxu0 0.0
  %73 = vmatprep.subr.mxu0 0.0
  %74 = vmatpush1.msra.mxu0 0.0
  %75 = vmatprep.subr.mxu0 0.0
  %76 = vmatpush1.msra.mxu0 %v43
  %77 = vmatprep.subr.mxu0 0.0
  %78 = vmatpush2.msra.mxu0 0.0
  %79 = vmatprep.subr.mxu0 0.0
  %80 = vmatpush2.msra.mxu0 0.0
  %81 = vmatprep.subr.mxu0 0.0
  %82 = vmatpush2.msra.mxu0 0.0
  %83 = vmatprep.subr.mxu0 0.0
  %84 = vmatpush2.msra.mxu0 0.0
  %85 = vmatprep.subr.mxu0 0.0
  %86 = vmatpush2.msra.mxu0 0.0
  %87 = vmatprep.subr.mxu0 0.0
  %88 = vmatpush2.msra.mxu0 0.0
  %89 = vmatprep.subr.mxu0 0.0
  %90 = vmatpush2.msra.mxu0 0.0
  %91 = vmatprep.subr.mxu0 0.0
  %92 = vmatpush2.msra.mxu0 0.0
  %93 = vmatprep.subr.mxu0 0.0
  %94 = vmatpush2.msra.mxu0 0.0
  %95 = vmatprep.subr.mxu0 0.0
  %96 = vmatpush2.msra.mxu0 0.0
  %97 = vmatprep.subr.mxu0 0.0
  %98 = vmatpush2.msra.mxu0 0.0
  %99 = vmatprep.subr.mxu0 0.0
  %100 = vmatpush2.msra.mxu0 0.0
  %101 = vmatprep.subr.mxu0 0.0
  %102 = vmatpush2.msra.mxu0 0.0
  %103 = vmatprep.subr.mxu0 0.0
  %104 = vmatpush2.msra.mxu0 0.0
  %105 = vmatprep.subr.mxu0 0.0
  %106 = vmatpush2.msra.mxu0 0.0
  %107 = vmatprep.subr.mxu0 0.0
  %108 = vmatpush2.msra.mxu0 0.0
  %109 = vmatprep.mubr.f32.mxu0 0.0
  %110 = vmatmul.mubr.f32.gmra.mxu0 %v39
  %v111 = vpop.f32.mrf.mxu0
  %v112 = vadd.f32 %v35, %v111
  %v113 = vpop.f32.mrf.mxu0
  %114 = vdwg.mxu0
  %v115 = vand.u32 2147483647, %v112
  %vm116 = vcmp.le.f32.partialorder %v115, 0.7853982
  %vm117 = vcmp.lt.s32.totalorder %v112, 0
  %v118 = vand.u32 %v112, 2139095040
  %v119 = vshrl.u32 %v118, 23
  %v120 = vsub.s32 %v119, 127
  %v121 = vand.u32 2147483647, %v112
  %v122 = vand.u32 %v121, 8388607
  %v123 = vor.u32 %v122, 8388608
  %v124 = vsub.s32 0, %v123
  %v125 = vadd.s32 %v120, 1
  %vm126 = vcmp.gt.s32.totalorder %v125, 0
  %v127 = vsel %vm126, %v125, 0
  %v128 = vshrl.u32 %v127, 5
  %v129 = vand.u32 %v127, 31
  %v130 = vsub.s32 32, %v129
  %v131 = vshrl.u32 683565275, %v130
  %v132 = vshll.u32 683565275, %v129
  %v133 = vshrl.u32 2475754826, %v130
  %v134 = vor.u32 %v132, %v133
  %v135 = vshll.u32 2475754826, %v129
  %v136 = vshrl.u32 2131351028, %v130
  %v137 = vor.u32 %v135, %v136
  %v138 = vshll.u32 2131351028, %v129
  %v139 = vshrl.u32 2102212464, %v130
  %v140 = vor.u32 %v138, %v139
  %v141 = vshll.u32 2102212464, %v129
  %v142 = vshrl.u32 920167782, %v130
  %v143 = vor.u32 %v141, %v142
  %v144 = vshll.u32 920167782, %v129
  %v145 = vshrl.u32 1326507024, %v130
  %v146 = vor.u32 %v144, %v145
  %vm147 = vcmp.lt.s32.totalorder %v128, 1
  %vm148 = vcmp.lt.s32.totalorder %v128, 2
  %vm149 = vcmp.lt.s32.totalorder %v128, 3
  %vm150 = vcmp.lt.s32.totalorder %v128, 4
  %v151 = vsel %vm147, %v131, %v134
  %v152 = vsel %vm150, %v140, 2102212464
  %v153 = vsel %vm149, %v137, %v152
  %v154 = vsel %vm148, %v151, %v153
  %v155 = vsel %vm147, %v134, %v137
  %v156 = vsel %vm150, %v143, 920167782
  %v157 = vsel %vm149, %v140, %v156
  %v158 = vsel %vm148, %v155, %v157
  %v159 = vsel %vm147, %v137, %v140
  %v160 = vsel %vm150, %v146, 1326507024
  %v161 = vsel %vm149, %v143, %v160
  %v162 = vsel %vm148, %v159, %v161
  %v163 = vshll.u32 %v123, 8
  %v164 = vmul.u32.u64.compose %v163, %v162
  %v165 = vextract.low.u32 %v164
  %v166 = vextract.high.u32 %v164
  %v167 = vmul.u32.u64.compose %v163, %v158
  %v168 = vextract.low.u32 %v167
  %v169 = vextract.high.u32 %v167
  %v170 = vmul.u32 %v163, %v154
  %v171 = vadd.s32 %v166, %v168
  %vm172 = vc.u32 %v166, %v168
  %v173 = vadd.s32 %v169, 1
  %v174 = vsel %vm172, %v173, %v169
  %v175 = vadd.s32 %v170, %v174
  %v176 = vadd.s32 %v175, 536870912
  %v177 = vshrl.u32 %v176, 30
  %v178 = vshll.u32 %v177, 30
  %v179 = vsub.s32 %v175, %v178
  %vm180 = vcmp.lt.s32.totalorder %v179, 0
  %v181 = vsub.s32 0, %v179
  %v182 = vsel %vm180, %v181, %v179
  %v183 = vclz %v182
  %v184 = vsub.s32 %v183, 2
  %vm185 = vcmp.gt.s32.totalorder 0, %v184
  %v186 = vsel %vm185, 0, %v184
  %v187 = vsub.s32 32, %v186
  %v188 = vshll.u32 %v179, %v186
  %v189 = vshrl.u32 %v171, %v187
  %v190 = vor.u32 %v188, %v189
  %v191 = vsub.s32 4294967266, %v186
  %v192 = vadd.s32 %v191, 127
  %v193 = vshll.u32 %v192, 23
  %v194 = vor.u32 4788187, %v193
  %v195 = vand.u32 2147483647, %v194
  %v197 = vcvt.s32.f32 %v190
  %v198 = vmul.f32 %v197, %v195
  %v199 = vxor.u32 %v198, 2147483648
  %v200 = vsel %vm117, %v199, %v198
  %v201 = vsub.s32 4, %v177
  %v202 = vsel %vm117, %v201, %v177
  %v203 = vsel %vm116, %v112, %v200
  %v204 = vsel %vm116, 0, %v202
  %v205 = vcosq.f32.pop %v203
  %v206 = vsinq.f32.pop %v203
  %vm207 = vweird.f32 %v112
  %v208 = vadd.s32 %v204, 3
  %v209 = vand.u32 %v208, 3
  %vm210 = vcmp.lt.s32.totalorder %v209, 2
  %vm211 = vcmp.eq.s32.totalorder %v209, 0
  %v212 = vxor.u32 %v206, 2147483648
  %v213 = vsel %vm211, %v205, %v212
  %vm214 = vcmp.eq.s32.totalorder %v209, 2
  %v215 = vxor.u32 %v205, 2147483648
  %v216 = vsel %vm214, %v215, %v206
  %v217 = vsel %vm210, %v213, %v216
  %v218 = vsel %vm207, nan, %v217
  %v219 = vand.u32 2147483647, %v112
  %vm220 = vcmp.le.f32.partialorder %v219, 0.7853982
  %vm221 = vcmp.lt.s32.totalorder %v112, 0
  %v222 = vand.u32 %v112, 2139095040
  %v223 = vshrl.u32 %v222, 23
  %v224 = vsub.s32 %v223, 127
  %v225 = vand.u32 2147483647, %v112
  %v226 = vand.u32 %v225, 8388607
  %v227 = vor.u32 %v226, 8388608
  %v228 = vsub.s32 0, %v227
  %v229 = vadd.s32 %v224, 1
  %vm230 = vcmp.gt.s32.totalorder %v229, 0
  %v231 = vsel %vm230, %v229, 0
  %v232 = vshrl.u32 %v231, 5
  %v233 = vand.u32 %v231, 31
  %v234 = vsub.s32 32, %v233
  %v235 = vshrl.u32 683565275, %v234
  %v236 = vshll.u32 683565275, %v233
  %v237 = vshrl.u32 2475754826, %v234
  %v238 = vor.u32 %v236, %v237
  %v239 = vshll.u32 2475754826, %v233
  %v240 = vshrl.u32 2131351028, %v234
  %v241 = vor.u32 %v239, %v240
  %v242 = vshll.u32 2131351028, %v233
  %v243 = vshrl.u32 2102212464, %v234
  %v244 = vor.u32 %v242, %v243
  %v245 = vshll.u32 2102212464, %v233
  %v246 = vshrl.u32 920167782, %v234
  %v247 = vor.u32 %v245, %v246
  %v248 = vshll.u32 920167782, %v233
  %v249 = vshrl.u32 1326507024, %v234
  %v250 = vor.u32 %v248, %v249
  %vm251 = vcmp.lt.s32.totalorder %v232, 1
  %vm252 = vcmp.lt.s32.totalorder %v232, 2
  %vm253 = vcmp.lt.s32.totalorder %v232, 3
  %vm254 = vcmp.lt.s32.totalorder %v232, 4
  %v255 = vsel %vm251, %v235, %v238
  %v256 = vsel %vm254, %v244, 2102212464
  %v257 = vsel %vm253, %v241, %v256
  %v258 = vsel %vm252, %v255, %v257
  %v259 = vsel %vm251, %v238, %v241
  %v260 = vsel %vm254, %v247, 920167782
  %v261 = vsel %vm253, %v244, %v260
  %v262 = vsel %vm252, %v259, %v261
  %v263 = vsel %vm251, %v241, %v244
  %v264 = vsel %vm254, %v250, 1326507024
  %v265 = vsel %vm253, %v247, %v264
  %v266 = vsel %vm252, %v263, %v265
  %v267 = vshll.u32 %v227, 8
  %v268 = vmul.u32.u64.compose %v267, %v266
  %v269 = vextract.low.u32 %v268
  %v270 = vextract.high.u32 %v268
  %v271 = vmul.u32.u64.compose %v267, %v262
  %v272 = vextract.low.u32 %v271
  %v273 = vextract.high.u32 %v271
  %v274 = vmul.u32 %v267, %v258
  %v275 = vadd.s32 %v270, %v272
  %vm276 = vc.u32 %v270, %v272
  %v277 = vadd.s32 %v273, 1
  %v278 = vsel %vm276, %v277, %v273
  %v279 = vadd.s32 %v274, %v278
  %v280 = vadd.s32 %v279, 536870912
  %v281 = vshrl.u32 %v280, 30
  %v282 = vshll.u32 %v281, 30
  %v283 = vsub.s32 %v279, %v282
  %vm284 = vcmp.lt.s32.totalorder %v283, 0
  %v285 = vsub.s32 0, %v283
  %v286 = vsel %vm284, %v285, %v283
  %v287 = vclz %v286
  %v288 = vsub.s32 %v287, 2
  %vm289 = vcmp.gt.s32.totalorder 0, %v288
  %v290 = vsel %vm289, 0, %v288
  %v291 = vsub.s32 32, %v290
  %v292 = vshll.u32 %v283, %v290
  %v293 = vshrl.u32 %v275, %v291
  %v294 = vor.u32 %v292, %v293
  %v295 = vsub.s32 4294967266, %v290
  %v296 = vadd.s32 %v295, 127
  %v297 = vshll.u32 %v296, 23
  %v298 = vor.u32 4788187, %v297
  %v299 = vand.u32 2147483647, %v298
  %v301 = vcvt.s32.f32 %v294
  %v302 = vmul.f32 %v301, %v299
  %v303 = vxor.u32 %v302, 2147483648
  %v304 = vsel %vm221, %v303, %v302
  %v305 = vsub.s32 4, %v281
  %v306 = vsel %vm221, %v305, %v281
  %v307 = vsel %vm220, %v112, %v304
  %v308 = vsel %vm220, 0, %v306
  %v309 = vcosq.f32.pop %v307
  %v310 = vsinq.f32.pop %v307
  %vm311 = vweird.f32 %v112
  %v312 = vand.u32 %v308, 3
  %vm313 = vcmp.lt.s32.totalorder %v312, 2
  %vm314 = vcmp.eq.s32.totalorder %v312, 0
  %v315 = vxor.u32 %v310, 2147483648
  %v316 = vsel %vm314, %v309, %v315
  %vm317 = vcmp.eq.s32.totalorder %v312, 2
  %v318 = vxor.u32 %v309, 2147483648
  %v319 = vsel %vm317, %v318, %v310
  %v320 = vsel %vm313, %v316, %v319
  %v321 = vsel %vm311, nan, %v320
  %323 = vrot.lane.b32.xlu0 %v112, 120
  %v324 = vpop.permute.xlu0 %323
  %v326 = vmul.f32 %v112, %v324
  %v327 = vsel %vm37, %v112, %v218
  %vm328 = vcmask 64512
  %v329 = vsel %vm328, %v327, %v321
  %vm330 = vcmask 97280
  %v331 = vsel %vm330, %v329, %v112
  %vm332 = vcmask 130048
  %v333 = vsel %vm332, %v331, %v326
  %v334 = vld [vmem:[%s3] sm:$0xff]
  %v335 = vld [vmem:[%s3 + $0x8] sm:$0xff]
  %v336 = vld [vmem:[%s3 + $0x10] sm:$0xf]
  %v337 = vld [vmem:[%s4] sm:$0x1]
  %v339 = vlaneseq
  %v340 = vshrl.u32 %v339, 7
  %v341 = vsub.s32 0, %v340
  %v342 = vrot.slane %v337, %v341
  %vm344 = vcmask 162816
  %v346 = vsel %vm344, %v333, 0
  %v349 = vsel %vm41, %v336, 0
  %351 = vmatprep.subr.mxu0 0.0
  %352 = vmatpush1.msra.mxu0 0.0
  %353 = vmatprep.subr.mxu0 0.0
  %354 = vmatpush1.msra.mxu0 0.0
  %355 = vmatprep.subr.mxu0 0.0
  %356 = vmatpush1.msra.mxu0 0.0
  %357 = vmatprep.subr.mxu0 0.0
  %358 = vmatpush1.msra.mxu0 0.0
  %359 = vmatprep.subr.mxu0 0.0
  %360 = vmatpush1.msra.mxu0 0.0
  %361 = vmatprep.subr.mxu0 0.0
  %362 = vmatpush1.msra.mxu0 0.0
  %363 = vmatprep.subr.mxu0 0.0
  %364 = vmatpush1.msra.mxu0 0.0
  %365 = vmatprep.subr.mxu0 0.0
  %366 = vmatpush1.msra.mxu0 0.0
  %367 = vmatprep.subr.mxu0 0.0
  %368 = vmatpush1.msra.mxu0 0.0
  %369 = vmatprep.subr.mxu0 0.0
  %370 = vmatpush1.msra.mxu0 0.0
  %371 = vmatprep.subr.mxu0 0.0
  %372 = vmatpush1.msra.mxu0 0.0
  %373 = vmatprep.subr.mxu0 0.0
  %374 = vmatpush1.msra.mxu0 0.0
  %375 = vmatprep.subr.mxu0 0.0
  %376 = vmatpush1.msra.mxu0 0.0
  %377 = vmatprep.subr.mxu0 0.0
  %378 = vmatpush1.msra.mxu0 %v349
  %379 = vmatprep.subr.mxu0 0.0
  %380 = vmatpush1.msra.mxu0 %v335
  %381 = vmatprep.subr.mxu0 0.0
  %382 = vmatpush1.msra.mxu0 %v334
  %383 = vmatprep.subr.mxu0 0.0
  %384 = vmatpush2.msra.mxu0 0.0
  %385 = vmatprep.subr.mxu0 0.0
  %386 = vmatpush2.msra.mxu0 0.0
  %387 = vmatprep.subr.mxu0 0.0
  %388 = vmatpush2.msra.mxu0 0.0
  %389 = vmatprep.subr.mxu0 0.0
  %390 = vmatpush2.msra.mxu0 0.0
  %391 = vmatprep.subr.mxu0 0.0
  %392 = vmatpush2.msra.mxu0 0.0
  %393 = vmatprep.subr.mxu0 0.0
  %394 = vmatpush2.msra.mxu0 0.0
  %395 = vmatprep.subr.mxu0 0.0
  %396 = vmatpush2.msra.mxu0 0.0
  %397 = vmatprep.subr.mxu0 0.0
  %398 = vmatpush2.msra.mxu0 0.0
  %399 = vmatprep.subr.mxu0 0.0
  %400 = vmatpush2.msra.mxu0 0.0
  %401 = vmatprep.subr.mxu0 0.0
  %402 = vmatpush2.msra.mxu0 0.0
  %403 = vmatprep.subr.mxu0 0.0
  %404 = vmatpush2.msra.mxu0 0.0
  %405 = vmatprep.subr.mxu0 0.0
  %406 = vmatpush2.msra.mxu0 0.0
  %407 = vmatprep.subr.mxu0 0.0
  %408 = vmatpush2.msra.mxu0 0.0
  %409 = vmatprep.subr.mxu0 0.0
  %410 = vmatpush2.msra.mxu0 0.0
  %411 = vmatprep.subr.mxu0 0.0
  %412 = vmatpush2.msra.mxu0 0.0
  %413 = vmatprep.subr.mxu0 0.0
  %414 = vmatpush2.msra.mxu0 0.0
  %415 = vmatprep.mubr.f32.mxu0 0.0
  %416 = vmatmul.mubr.f32.gmra.mxu0 %v346
  %v417 = vpop.f32.mrf.mxu0
  %v418 = vadd.f32 %v342, %v417
  %v419 = vpop.f32.mrf.mxu0
  %420 = vdwg.mxu0
  %v421 = vand.u32 2147483647, %v418
  %vm422 = vcmp.le.f32.partialorder %v421, 0.7853982
  %vm423 = vcmp.lt.s32.totalorder %v418, 0
  %v424 = vand.u32 %v418, 2139095040
  %v425 = vshrl.u32 %v424, 23
  %v426 = vsub.s32 %v425, 127
  %v427 = vand.u32 2147483647, %v418
  %v428 = vand.u32 %v427, 8388607
  %v429 = vor.u32 %v428, 8388608
  %v430 = vsub.s32 0, %v429
  %v431 = vadd.s32 %v426, 1
  %vm432 = vcmp.gt.s32.totalorder %v431, 0
  %v433 = vsel %vm432, %v431, 0
  %v434 = vshrl.u32 %v433, 5
  %v435 = vand.u32 %v433, 31
  %v436 = vsub.s32 32, %v435
  %v437 = vshrl.u32 683565275, %v436
  %v438 = vshll.u32 683565275, %v435
  %v439 = vshrl.u32 2475754826, %v436
  %v440 = vor.u32 %v438, %v439
  %v441 = vshll.u32 2475754826, %v435
  %v442 = vshrl.u32 2131351028, %v436
  %v443 = vor.u32 %v441, %v442
  %v444 = vshll.u32 2131351028, %v435
  %v445 = vshrl.u32 2102212464, %v436
  %v446 = vor.u32 %v444, %v445
  %v447 = vshll.u32 2102212464, %v435
  %v448 = vshrl.u32 920167782, %v436
  %v449 = vor.u32 %v447, %v448
  %v450 = vshll.u32 920167782, %v435
  %v451 = vshrl.u32 1326507024, %v436
  %v452 = vor.u32 %v450, %v451
  %vm453 = vcmp.lt.s32.totalorder %v434, 1
  %vm454 = vcmp.lt.s32.totalorder %v434, 2
  %vm455 = vcmp.lt.s32.totalorder %v434, 3
  %vm456 = vcmp.lt.s32.totalorder %v434, 4
  %v457 = vsel %vm453, %v437, %v440
  %v458 = vsel %vm456, %v446, 2102212464
  %v459 = vsel %vm455, %v443, %v458
  %v460 = vsel %vm454, %v457, %v459
  %v461 = vsel %vm453, %v440, %v443
  %v462 = vsel %vm456, %v449, 920167782
  %v463 = vsel %vm455, %v446, %v462
  %v464 = vsel %vm454, %v461, %v463
  %v465 = vsel %vm453, %v443, %v446
  %v466 = vsel %vm456, %v452, 1326507024
  %v467 = vsel %vm455, %v449, %v466
  %v468 = vsel %vm454, %v465, %v467
  %v469 = vshll.u32 %v429, 8
  %v470 = vmul.u32.u64.compose %v469, %v468
  %v471 = vextract.low.u32 %v470
  %v472 = vextract.high.u32 %v470
  %v473 = vmul.u32.u64.compose %v469, %v464
  %v474 = vextract.low.u32 %v473
  %v475 = vextract.high.u32 %v473
  %v476 = vmul.u32 %v469, %v460
  %v477 = vadd.s32 %v472, %v474
  %vm478 = vc.u32 %v472, %v474
  %v479 = vadd.s32 %v475, 1
  %v480 = vsel %vm478, %v479, %v475
  %v481 = vadd.s32 %v476, %v480
  %v482 = vadd.s32 %v481, 536870912
  %v483 = vshrl.u32 %v482, 30
  %v484 = vshll.u32 %v483, 30
  %v485 = vsub.s32 %v481, %v484
  %vm486 = vcmp.lt.s32.totalorder %v485, 0
  %v487 = vsub.s32 0, %v485
  %v488 = vsel %vm486, %v487, %v485
  %v489 = vclz %v488
  %v490 = vsub.s32 %v489, 2
  %vm491 = vcmp.gt.s32.totalorder 0, %v490
  %v492 = vsel %vm491, 0, %v490
  %v493 = vsub.s32 32, %v492
  %v494 = vshll.u32 %v485, %v492
  %v495 = vshrl.u32 %v477, %v493
  %v496 = vor.u32 %v494, %v495
  %v497 = vsub.s32 4294967266, %v492
  %v498 = vadd.s32 %v497, 127
  %v499 = vshll.u32 %v498, 23
  %v500 = vor.u32 4788187, %v499
  %v501 = vand.u32 2147483647, %v500
  %v503 = vcvt.s32.f32 %v496
  %v504 = vmul.f32 %v503, %v501
  %v505 = vxor.u32 %v504, 2147483648
  %v506 = vsel %vm423, %v505, %v504
  %v507 = vsub.s32 4, %v483
  %v508 = vsel %vm423, %v507, %v483
  %v509 = vsel %vm422, %v418, %v506
  %v510 = vsel %vm422, 0, %v508
  %v511 = vcosq.f32.pop %v509
  %v512 = vsinq.f32.pop %v509
  %vm513 = vweird.f32 %v418
  %v514 = vadd.s32 %v510, 3
  %v515 = vand.u32 %v514, 3
  %vm516 = vcmp.lt.s32.totalorder %v515, 2
  %vm517 = vcmp.eq.s32.totalorder %v515, 0
  %v518 = vxor.u32 %v512, 2147483648
  %v519 = vsel %vm517, %v511, %v518
  %vm520 = vcmp.eq.s32.totalorder %v515, 2
  %v521 = vxor.u32 %v511, 2147483648
  %v522 = vsel %vm520, %v521, %v512
  %v523 = vsel %vm516, %v519, %v522
  %v524 = vsel %vm513, nan, %v523
  %v525 = vand.u32 2147483647, %v418
  %vm526 = vcmp.le.f32.partialorder %v525, 0.7853982
  %vm527 = vcmp.lt.s32.totalorder %v418, 0
  %v528 = vand.u32 %v418, 2139095040
  %v529 = vshrl.u32 %v528, 23
  %v530 = vsub.s32 %v529, 127
  %v531 = vand.u32 2147483647, %v418
  %v532 = vand.u32 %v531, 8388607
  %v533 = vor.u32 %v532, 8388608
  %v534 = vsub.s32 0, %v533
  %v535 = vadd.s32 %v530, 1
  %vm536 = vcmp.gt.s32.totalorder %v535, 0
  %v537 = vsel %vm536, %v535, 0
  %v538 = vshrl.u32 %v537, 5
  %v539 = vand.u32 %v537, 31
  %v540 = vsub.s32 32, %v539
  %v541 = vshrl.u32 683565275, %v540
  %v542 = vshll.u32 683565275, %v539
  %v543 = vshrl.u32 2475754826, %v540
  %v544 = vor.u32 %v542, %v543
  %v545 = vshll.u32 2475754826, %v539
  %v546 = vshrl.u32 2131351028, %v540
  %v547 = vor.u32 %v545, %v546
  %v548 = vshll.u32 2131351028, %v539
  %v549 = vshrl.u32 2102212464, %v540
  %v550 = vor.u32 %v548, %v549
  %v551 = vshll.u32 2102212464, %v539
  %v552 = vshrl.u32 920167782, %v540
  %v553 = vor.u32 %v551, %v552
  %v554 = vshll.u32 920167782, %v539
  %v555 = vshrl.u32 1326507024, %v540
  %v556 = vor.u32 %v554, %v555
  %vm557 = vcmp.lt.s32.totalorder %v538, 1
  %vm558 = vcmp.lt.s32.totalorder %v538, 2
  %vm559 = vcmp.lt.s32.totalorder %v538, 3
  %vm560 = vcmp.lt.s32.totalorder %v538, 4
  %v561 = vsel %vm557, %v541, %v544
  %v562 = vsel %vm560, %v550, 2102212464
  %v563 = vsel %vm559, %v547, %v562
  %v564 = vsel %vm558, %v561, %v563
  %v565 = vsel %vm557, %v544, %v547
  %v566 = vsel %vm560, %v553, 920167782
  %v567 = vsel %vm559, %v550, %v566
  %v568 = vsel %vm558, %v565, %v567
  %v569 = vsel %vm557, %v547, %v550
  %v570 = vsel %vm560, %v556, 1326507024
  %v571 = vsel %vm559, %v553, %v570
  %v572 = vsel %vm558, %v569, %v571
  %v573 = vshll.u32 %v533, 8
  %v574 = vmul.u32.u64.compose %v573, %v572
  %v575 = vextract.low.u32 %v574
  %v576 = vextract.high.u32 %v574
  %v577 = vmul.u32.u64.compose %v573, %v568
  %v578 = vextract.low.u32 %v577
  %v579 = vextract.high.u32 %v577
  %v580 = vmul.u32 %v573, %v564
  %v581 = vadd.s32 %v576, %v578
  %vm582 = vc.u32 %v576, %v578
  %v583 = vadd.s32 %v579, 1
  %v584 = vsel %vm582, %v583, %v579
  %v585 = vadd.s32 %v580, %v584
  %v586 = vadd.s32 %v585, 536870912
  %v587 = vshrl.u32 %v586, 30
  %v588 = vshll.u32 %v587, 30
  %v589 = vsub.s32 %v585, %v588
  %vm590 = vcmp.lt.s32.totalorder %v589, 0
  %v591 = vsub.s32 0, %v589
  %v592 = vsel %vm590, %v591, %v589
  %v593 = vclz %v592
  %v594 = vsub.s32 %v593, 2
  %vm595 = vcmp.gt.s32.totalorder 0, %v594
  %v596 = vsel %vm595, 0, %v594
  %v597 = vsub.s32 32, %v596
  %v598 = vshll.u32 %v589, %v596
  %v599 = vshrl.u32 %v581, %v597
  %v600 = vor.u32 %v598, %v599
  %v601 = vsub.s32 4294967266, %v596
  %v602 = vadd.s32 %v601, 127
  %v603 = vshll.u32 %v602, 23
  %v604 = vor.u32 4788187, %v603
  %v605 = vand.u32 2147483647, %v604
  %v607 = vcvt.s32.f32 %v600
  %v608 = vmul.f32 %v607, %v605
  %v609 = vxor.u32 %v608, 2147483648
  %v610 = vsel %vm527, %v609, %v608
  %v611 = vsub.s32 4, %v587
  %v612 = vsel %vm527, %v611, %v587
  %v613 = vsel %vm526, %v418, %v610
  %v614 = vsel %vm526, 0, %v612
  %v615 = vcosq.f32.pop %v613
  %v616 = vsinq.f32.pop %v613
  %vm617 = vweird.f32 %v418
  %v618 = vand.u32 %v614, 3
  %vm619 = vcmp.lt.s32.totalorder %v618, 2
  %vm620 = vcmp.eq.s32.totalorder %v618, 0
  %v621 = vxor.u32 %v616, 2147483648
  %v622 = vsel %vm620, %v615, %v621
  %vm623 = vcmp.eq.s32.totalorder %v618, 2
  %v624 = vxor.u32 %v615, 2147483648
  %v625 = vsel %vm623, %v624, %v616
  %v626 = vsel %vm619, %v622, %v625
  %v627 = vsel %vm617, nan, %v626
  %629 = vrot.lane.b32.xlu0 %v418, 120
  %v630 = vpop.permute.xlu0 %629
  %v632 = vmul.f32 %v418, %v630
  %v633 = vsel %vm37, %v418, %v524
  %v634 = vsel %vm328, %v633, %v627
  %v635 = vsel %vm330, %v634, %v418
  %v636 = vsel %vm332, %v635, %v632
  %v637 = vld [vmem:[%s5] sm:$0xff]
  %v638 = vld [vmem:[%s5 + $0x8] sm:$0xff]
  %v639 = vld [vmem:[%s5 + $0x10] sm:$0xf]
  %v640 = vld [vmem:[#allocation2] sm:$0x1]
  %v642 = vlaneseq
  %v643 = vshrl.u32 %v642, 7
  %v644 = vsub.s32 0, %v643
  %v645 = vrot.slane %v640, %v644
  %v648 = vsel %vm344, %v636, 0
  %v651 = vsel %vm41, %v639, 0
  %653 = vmatprep.subr.mxu0 0.0
  %654 = vmatpush1.msra.mxu0 0.0
  %655 = vmatprep.subr.mxu0 0.0
  %656 = vmatpush1.msra.mxu0 0.0
  %657 = vmatprep.subr.mxu0 0.0
  %658 = vmatpush1.msra.mxu0 0.0
  %659 = vmatprep.subr.mxu0 0.0
  %660 = vmatpush1.msra.mxu0 0.0
  %661 = vmatprep.subr.mxu0 0.0
  %662 = vmatpush1.msra.mxu0 0.0
  %663 = vmatprep.subr.mxu0 0.0
  %664 = vmatpush1.msra.mxu0 0.0
  %665 = vmatprep.subr.mxu0 0.0
  %666 = vmatpush1.msra.mxu0 0.0
  %667 = vmatprep.subr.mxu0 0.0
  %668 = vmatpush1.msra.mxu0 0.0
  %669 = vmatprep.subr.mxu0 0.0
  %670 = vmatpush1.msra.mxu0 0.0
  %671 = vmatprep.subr.mxu0 0.0
  %672 = vmatpush1.msra.mxu0 0.0
  %673 = vmatprep.subr.mxu0 0.0
  %674 = vmatpush1.msra.mxu0 0.0
  %675 = vmatprep.subr.mxu0 0.0
  %676 = vmatpush1.msra.mxu0 0.0
  %677 = vmatprep.subr.mxu0 0.0
  %678 = vmatpush1.msra.mxu0 0.0
  %679 = vmatprep.subr.mxu0 0.0
  %680 = vmatpush1.msra.mxu0 %v651
  %681 = vmatprep.subr.mxu0 0.0
  %682 = vmatpush1.msra.mxu0 %v638
  %683 = vmatprep.subr.mxu0 0.0
  %684 = vmatpush1.msra.mxu0 %v637
  %685 = vmatprep.subr.mxu0 0.0
  %686 = vmatpush2.msra.mxu0 0.0
  %687 = vmatprep.subr.mxu0 0.0
  %688 = vmatpush2.msra.mxu0 0.0
  %689 = vmatprep.subr.mxu0 0.0
  %690 = vmatpush2.msra.mxu0 0.0
  %691 = vmatprep.subr.mxu0 0.0
  %692 = vmatpush2.msra.mxu0 0.0
  %693 = vmatprep.subr.mxu0 0.0
  %694 = vmatpush2.msra.mxu0 0.0
  %695 = vmatprep.subr.mxu0 0.0
  %696 = vmatpush2.msra.mxu0 0.0
  %697 = vmatprep.subr.mxu0 0.0
  %698 = vmatpush2.msra.mxu0 0.0
  %699 = vmatprep.subr.mxu0 0.0
  %700 = vmatpush2.msra.mxu0 0.0
  %701 = vmatprep.subr.mxu0 0.0
  %702 = vmatpush2.msra.mxu0 0.0
  %703 = vmatprep.subr.mxu0 0.0
  %704 = vmatpush2.msra.mxu0 0.0
  %705 = vmatprep.subr.mxu0 0.0
  %706 = vmatpush2.msra.mxu0 0.0
  %707 = vmatprep.subr.mxu0 0.0
  %708 = vmatpush2.msra.mxu0 0.0
  %709 = vmatprep.subr.mxu0 0.0
  %710 = vmatpush2.msra.mxu0 0.0
  %711 = vmatprep.subr.mxu0 0.0
  %712 = vmatpush2.msra.mxu0 0.0
  %713 = vmatprep.subr.mxu0 0.0
  %714 = vmatpush2.msra.mxu0 0.0
  %715 = vmatprep.subr.mxu0 0.0
  %716 = vmatpush2.msra.mxu0 0.0
  %717 = vmatprep.mubr.f32.mxu0 0.0
  %718 = vmatmul.mubr.f32.gmra.mxu0 %v648
  %v719 = vpop.f32.mrf.mxu0
  %v720 = vadd.f32 %v645, %v719
  %v721 = vpop.f32.mrf.mxu0
  %722 = vdwg.mxu0
  %vm723 = vcmask 7168
  %724 = vst.msk [vmem:[%s7] sm:$0xff] %vm723, %v720
  // Predicated region
  $region30: #{tpu_custom_call.1} parent=0 // pred_check
    _
  $region31: #{tpu_custom_call.1} parent=0 // pred_check_branch
    %726 = sbr.rel (0) target = $region33
  $region32: #{tpu_custom_call.1} parent=0 // pred_region
    _
  $region33: #{tpu_custom_call.1} parent=0 // pred_fallthru
    _
  // Predicated region
  $region34: #{tpu_custom_call.1} parent=0 // pred_check
    _
  $region35: #{tpu_custom_call.1} parent=0 // pred_check_branch
    %728 = sbr.rel (0) target = $region37
  $region36: #{tpu_custom_call.1} parent=0 // pred_region
    _
  $region37: #{tpu_custom_call.1} parent=0 // pred_fallthru
    _

</llo_original>
